<compile_context>
chip_gen: v7x
topology: tpu7x:2x2x1
jax: 0.10.0
libtpu: 0.0.40
codegen_flags: <defaults>
</compile_context>

<pallas_src>
import jax
import jax.numpy as jnp
from jax.experimental import pallas as pl
from jax.experimental.pallas import tpu as pltpu

LANE = 128            # TPU lane width; all feature dims are padded to this
HIDDEN = 64

# Row layout of the packed (P_ROWS, LANE) f32 parameter slab.
W1_OFF, W2_OFF, W3_OFF = 0, 128, 256          # each weight occupies 128 rows
B1_ROW, B2_ROW, B3_ROW = 384, 392, 400        # bias rows, 8-aligned sublanes
P_ROWS = 408                                  # 51 * 8 -> sublane aligned


def _round_up(n, m):
    return ((n + m - 1) // m) * m


def _mlp_kernel(x_ref, p_ref, o_ref):
    """x_ref: (TB, 128)  p_ref: (408, 128)  o_ref: (TB, 128), all f32 in VMEM."""
    x = x_ref[...]
    w1 = p_ref[W1_OFF:W1_OFF + LANE, :]
    w2 = p_ref[W2_OFF:W2_OFF + LANE, :]
    w3 = p_ref[W3_OFF:W3_OFF + LANE, :]
    b1 = p_ref[B1_ROW:B1_ROW + 1, :]          # (1, 128), padded cols are 0
    b2 = p_ref[B2_ROW:B2_ROW + 1, :]
    b3 = p_ref[B3_ROW:B3_ROW + 1, :]

    h1 = jnp.maximum(jnp.dot(x, w1, preferred_element_type=jnp.float32) + b1, 0.0)
    h2 = jnp.maximum(jnp.dot(h1, w2, preferred_element_type=jnp.float32) + b2, 0.0)
    o_ref[...] = jnp.dot(h2, w3, preferred_element_type=jnp.float32) + b3


def pack_params(params, input_size, num_actions, hidden=HIDDEN):
    """Pack (transposed) weights + biases into one zero-padded (408,128) slab."""
    p = jnp.zeros((P_ROWS, LANE), jnp.float32)
    p = p.at[W1_OFF:W1_OFF + input_size, 0:hidden].set(params["w1"])
    p = p.at[W2_OFF:W2_OFF + hidden, 0:hidden].set(params["w2"])
    p = p.at[W3_OFF:W3_OFF + hidden, 0:num_actions].set(params["w3"])
    p = p.at[B1_ROW, 0:hidden].set(params["b1"].reshape(-1))
    p = p.at[B2_ROW, 0:hidden].set(params["b2"].reshape(-1))
    p = p.at[B3_ROW, 0:num_actions].set(params["b3"].reshape(-1))
    return p


def cartpole_qnetwork_forward(x, packed_params, num_actions):
    """x: (batch, input_size) f32.  packed_params: (408, 128) f32 slab."""
    batch, d_in = x.shape

    # Batch tiling: 128-row blocks once the batch is big enough, otherwise one
    # sublane-aligned block covering the whole (padded) batch.
    block_b = 128 if batch >= 128 else _round_up(batch, 8)
    b_pad = _round_up(batch, block_b)

    # Lane-dense, zero-padded input; zeros contribute exactly 0 to the dots.
    x_pad = jnp.zeros((b_pad, LANE), jnp.float32).at[:batch, :d_in].set(x)

    out_pad = pl.pallas_call(
        _mlp_kernel,
        out_shape=jax.ShapeDtypeStruct((b_pad, LANE), jnp.float32),
        grid_spec=pltpu.PrefetchScalarGridSpec(
            num_scalar_prefetch=0,
            grid=(b_pad // block_b,),
            in_specs=[
                pl.BlockSpec((block_b, LANE), lambda i: (i, 0)),   # x tile
                pl.BlockSpec((P_ROWS, LANE), lambda i: (0, 0)),    # params, resident
            ],
            out_specs=pl.BlockSpec((block_b, LANE), lambda i: (i, 0)),
        ),
        compiler_params=pltpu.CompilerParams(
            dimension_semantics=("parallel",),   # shards batch tiles on v7x 2 TCs
        ),
    )(x_pad, packed_params)

    return out_pad[:batch, :num_actions]


def init_params(key, input_size, num_actions, hidden=HIDDEN):
    """PyTorch nn.Linear default init: U(-1/sqrt(fan_in), 1/sqrt(fan_in)).
    Weights stored as (in_features, out_features) so kernel computes x @ W + b."""
    ks = jax.random.split(key, 6)

    def linear(kw, kb, fan_in, fan_out):
        bound = 1.0 / jnp.sqrt(jnp.float32(fan_in))
        w = jax.random.uniform(kw, (fan_in, fan_out), jnp.float32, -bound, bound)
        b = jax.random.uniform(kb, (fan_out,), jnp.float32, -bound, bound)
        return w, b

    w1, b1 = linear(ks[0], ks[1], input_size, hidden)
    w2, b2 = linear(ks[2], ks[3], hidden, hidden)
    w3, b3 = linear(ks[4], ks[5], hidden, num_actions)
    return {"w1": w1, "b1": b1, "w2": w2, "b2": b2, "w3": w3, "b3": b3}


def reference_forward(x, p):
    h1 = jnp.maximum(x @ p["w1"] + p["b1"], 0.0)
    h2 = jnp.maximum(h1 @ p["w2"] + p["b2"], 0.0)
    return h2 @ p["w3"] + p["b3"]


if __name__ == "__main__":
    # CartPole: observation dim = 4, num actions = 2.
    input_size, num_actions = 4, 2

    key = jax.random.PRNGKey(0)
    k_x, k_x2, k_p = jax.random.split(key, 3)
    params = init_params(k_p, input_size, num_actions)
    packed = pack_params(params, input_size, num_actions)

    # Small batch (single grid step).
    x_small = jax.random.normal(k_x, (8, input_size), dtype=jnp.float32)
    out_small = jax.block_until_ready(
        cartpole_qnetwork_forward(x_small, packed, num_actions))
    ref_small = reference_forward(x_small, params)
    assert out_small.shape == (8, num_actions)
    assert jnp.allclose(out_small, ref_small, atol=1e-5, rtol=1e-5)

    # Larger, non-multiple batch exercises the batch grid + padding path.
    x_big = jax.random.normal(k_x2, (300, input_size), dtype=jnp.float32)
    out_big = jax.block_until_ready(
        cartpole_qnetwork_forward(x_big, packed, num_actions))
    ref_big = reference_forward(x_big, params)
    assert out_big.shape == (300, num_actions)
    assert jnp.allclose(out_big, ref_big, atol=1e-5, rtol=1e-5)

    print("KERNEL_OK")
</pallas_src>

<mosaic_0001>
module attributes {stable_mosaic.version = 11 : i64} {
  func.func @_mlp_kernel(%arg0: i32, %arg1: memref<8x128xf32, #tpu.memory_space<vmem>>, %arg2: memref<408x128xf32, #tpu.memory_space<vmem>>, %arg3: memref<8x128xf32, #tpu.memory_space<vmem>>) attributes {dimension_semantics = [#tpu.dimension_semantics<parallel>], iteration_bounds = array<i64: 1>, scalar_prefetch = 0 : i64, scratch_operands = 0 : i64, tpu.core_type = #tpu.core_type<tc>, window_params = [{transform_indices = @transform_0, window_bounds = array<i64: 8, 128>}, {pipeline_mode = #tpu.pipeline_mode<synchronous>, transform_indices = @transform_1, window_bounds = array<i64: 408, 128>}, {transform_indices = @transform_2, window_bounds = array<i64: 8, 128>}]} {
    %c0 = arith.constant 0 : index
    %c0_0 = arith.constant 0 : index
    %0 = vector.load %arg1[%c0, %c0_0] : memref<8x128xf32, #tpu.memory_space<vmem>>, vector<8x128xf32>
    %c0_1 = arith.constant 0 : index
    %c0_2 = arith.constant 0 : index
    %1 = vector.load %arg2[%c0_1, %c0_2] : memref<408x128xf32, #tpu.memory_space<vmem>>, vector<128x128xf32>
    %c128 = arith.constant 128 : index
    %c0_3 = arith.constant 0 : index
    %2 = vector.load %arg2[%c128, %c0_3] : memref<408x128xf32, #tpu.memory_space<vmem>>, vector<128x128xf32>
    %c256 = arith.constant 256 : index
    %c0_4 = arith.constant 0 : index
    %3 = vector.load %arg2[%c256, %c0_4] : memref<408x128xf32, #tpu.memory_space<vmem>>, vector<128x128xf32>
    %c384 = arith.constant 384 : index
    %c0_5 = arith.constant 0 : index
    %4 = vector.load %arg2[%c384, %c0_5] : memref<408x128xf32, #tpu.memory_space<vmem>>, vector<1x128xf32>
    %c392 = arith.constant 392 : index
    %c0_6 = arith.constant 0 : index
    %5 = vector.load %arg2[%c392, %c0_6] : memref<408x128xf32, #tpu.memory_space<vmem>>, vector<1x128xf32>
    %c400 = arith.constant 400 : index
    %c0_7 = arith.constant 0 : index
    %6 = vector.load %arg2[%c400, %c0_7] : memref<408x128xf32, #tpu.memory_space<vmem>>, vector<1x128xf32>
    %cst = arith.constant dense<0.000000e+00> : vector<8x128xf32>
    %7 = tpu.matmul %0, %1, %cst {dimension_numbers = #tpu.dot_dimension_numbers<[1], [0], [0], [1], [0, 0, 1, 1], [], []>} : vector<8x128xf32>, vector<128x128xf32>, vector<8x128xf32> -> vector<8x128xf32>
    %8 = vector.broadcast %4 : vector<1x128xf32> to vector<8x128xf32>
    %9 = arith.addf %7, %8 : vector<8x128xf32>
    %cst_8 = arith.constant 0.000000e+00 : f32
    %10 = vector.broadcast %cst_8 : f32 to vector<8x128xf32>
    %11 = arith.maximumf %9, %10 : vector<8x128xf32>
    %cst_9 = arith.constant dense<0.000000e+00> : vector<8x128xf32>
    %12 = tpu.matmul %11, %2, %cst_9 {dimension_numbers = #tpu.dot_dimension_numbers<[1], [0], [0], [1], [0, 0, 1, 1], [], []>} : vector<8x128xf32>, vector<128x128xf32>, vector<8x128xf32> -> vector<8x128xf32>
    %13 = vector.broadcast %5 : vector<1x128xf32> to vector<8x128xf32>
    %14 = arith.addf %12, %13 : vector<8x128xf32>
    %cst_10 = arith.constant 0.000000e+00 : f32
    %15 = vector.broadcast %cst_10 : f32 to vector<8x128xf32>
    %16 = arith.maximumf %14, %15 : vector<8x128xf32>
    %cst_11 = arith.constant dense<0.000000e+00> : vector<8x128xf32>
    %17 = tpu.matmul %16, %3, %cst_11 {dimension_numbers = #tpu.dot_dimension_numbers<[1], [0], [0], [1], [0, 0, 1, 1], [], []>} : vector<8x128xf32>, vector<128x128xf32>, vector<8x128xf32> -> vector<8x128xf32>
    %18 = vector.broadcast %6 : vector<1x128xf32> to vector<8x128xf32>
    %19 = arith.addf %17, %18 : vector<8x128xf32>
    %c0_12 = arith.constant 0 : index
    %c0_13 = arith.constant 0 : index
    %20 = vector.load %arg3[%c0_12, %c0_13] : memref<8x128xf32, #tpu.memory_space<vmem>>, vector<8x128xf32>
    tpu.vector_store %arg3[%c0_12, %c0_13], %19 {strides = array<i32>} : memref<8x128xf32, #tpu.memory_space<vmem>>, vector<8x128xf32>,
    return
  }
  func.func @transform_0(%arg0: i32) -> (i32, i32) {
    %c0_i32 = arith.constant 0 : i32
    %c0_i32_0 = arith.constant 0 : i32
    return %arg0, %c0_i32 : i32, i32
  }
  func.func @transform_1(%arg0: i32) -> (i32, i32) {
    %c0_i32 = arith.constant 0 : i32
    %c0_i32_0 = arith.constant 0 : i32
    %c0_i32_1 = arith.constant 0 : i32
    return %c0_i32, %c0_i32_0 : i32, i32
  }
  func.func @transform_2(%arg0: i32) -> (i32, i32) {
    %c0_i32 = arith.constant 0 : i32
    %c0_i32_0 = arith.constant 0 : i32
    return %arg0, %c0_i32 : i32, i32
  }
}

</mosaic_0001>

<llo_original>
// kernel: tpu_custom_call.1
$region0: #{tpu_custom_call.1}
  #allocation0 [shape = 'u32[]', space=smem, size = 0x4, offset = 0x4, fixed_abs, tag = 'smem constant byte address 0x4 - core index']
  #allocation1 [shape = 'u32[144,128]{1,0:T(1,128)}', space=vmem, size = 0x12000, scoped, tag = 'internal scratch']
  %s0 = inlined_call_operand.hbm [shape: f32[8,128], index: 0, kind: input, shape index: {}]
  %s1 = inlined_call_operand.hbm [shape: f32[408,128], index: 1, kind: input, shape index: {}]
  %s2 = inlined_call_operand.hbm [shape: f32[8,128], index: 2, kind: output, shape index: {}]
  %s3 = sld [smem:[#allocation0]]
  $region26: #{tpu_custom_call.1} parent=0
    _
  %s5 = ssub.s32 1, %s3
  %s6 = scalar_select 0, %s5, %s3
  $region1: #{tpu_custom_call.1} parent=0
    #allocation2 [shape = 'u8[4096]{0}', space=vmem, size = 0x1000, scoped, tag = 'input window, operand 0, single buffered']
    #allocation3 [shape = 's32[1]{0}', space=sflag, size = 0x4, scoped, tag = 'scoped memory for tpu_custom_call.1']
    #allocation4 [shape = 's32[1]{0}', space=sflag, size = 0x4, scoped, tag = 'scoped memory for tpu_custom_call.1']
    #allocation5 [shape = 'u8[208896]{0}', space=vmem, size = 0x33000, scoped, tag = 'input window, operand 1, single buffered']
    #allocation6 [shape = 's32[1]{0}', space=sflag, size = 0x4, scoped, tag = 'scoped memory for tpu_custom_call.1']
    #allocation7 [shape = 'u8[4096]{0}', space=vmem, size = 0x1000, scoped, tag = 'output window, operand 0, single buffered']
    %7 = vsyncpa [#allocation3], 0
    %8 = vsyncpa [#allocation6], 0
    %9 = vsyncpa [#allocation4], 0
    // Predicated region
    $region2: #{tpu_custom_call.1} parent=1 // pred_check
      _
    $region3: #{tpu_custom_call.1} parent=1 // pred_check_branch
      %11 = sbr.rel (0) target = $region5
    $region4: #{tpu_custom_call.1} parent=1 // pred_region
      %s13 = ssub.s32 128, 128
      %14 = vsyncadd [#allocation3], %s13
      %s16 = sshll.u32 [#allocation2], 4
      %s17 = int_to_ptr.vmem [resolvable:$true] %s16
      %19 = dma.hbm_to_vmem [thread:$0]  %s0, 128, %s17, [#allocation3]
    $region5: #{tpu_custom_call.1} parent=1 // pred_fallthru
      _
    // Predicated region
    $region6: #{tpu_custom_call.1} parent=1 // pred_check
      _
    $region7: #{tpu_custom_call.1} parent=1 // pred_check_branch
      %21 = sbr.rel (0) target = $region9
    $region8: #{tpu_custom_call.1} parent=1 // pred_region
      %s23 = ssub.s32 6528, 6528
      %24 = vsyncadd [#allocation6], %s23
      %s25 = sshll.u32 [#allocation5], 4
      %s26 = int_to_ptr.vmem [resolvable:$true] %s25
      %31 = dma.hbm_to_vmem [thread:$0]  %s1, 6528, %s26, [#allocation6], 128, 128, 8
    $region9: #{tpu_custom_call.1} parent=1 // pred_fallthru
      _
    // Predicated region
    $region10: #{tpu_custom_call.1} parent=1 // pred_check
      _
    $region11: #{tpu_custom_call.1} parent=1 // pred_check_branch
      %33 = sbr.rel (0) target = $region13
    $region12: #{tpu_custom_call.1} parent=1 // pred_region
      %34 = dma.done [#allocation3], 128
    $region13: #{tpu_custom_call.1} parent=1 // pred_fallthru
      _
    // Predicated region
    $region14: #{tpu_custom_call.1} parent=1 // pred_check
      _
    $region15: #{tpu_custom_call.1} parent=1 // pred_check_branch
      %36 = sbr.rel (0) target = $region17
    $region16: #{tpu_custom_call.1} parent=1 // pred_region
      %37 = dma.done [#allocation6], 6528
    $region17: #{tpu_custom_call.1} parent=1 // pred_fallthru
      _
    %v38 = vld [vmem:[#allocation2] sm:$0xff]
    %v39 = vld [vmem:[#allocation5] sm:$0xff]
    %v40 = vld [vmem:[#allocation5 + $0x8] sm:$0xff]
    %v41 = vld [vmem:[#allocation5 + $0x10] sm:$0xff]
    %v42 = vld [vmem:[#allocation5 + $0x18] sm:$0xff]
    %v43 = vld [vmem:[#allocation5 + $0x20] sm:$0xff]
    %v44 = vld [vmem:[#allocation5 + $0x28] sm:$0xff]
    %v45 = vld [vmem:[#allocation5 + $0x30] sm:$0xff]
    %v46 = vld [vmem:[#allocation5 + $0x38] sm:$0xff]
    %v47 = vld [vmem:[#allocation5 + $0x40] sm:$0xff]
    %v48 = vld [vmem:[#allocation5 + $0x48] sm:$0xff]
    %v49 = vld [vmem:[#allocation5 + $0x50] sm:$0xff]
    %v50 = vld [vmem:[#allocation5 + $0x58] sm:$0xff]
    %v51 = vld [vmem:[#allocation5 + $0x60] sm:$0xff]
    %v52 = vld [vmem:[#allocation5 + $0x68] sm:$0xff]
    %v53 = vld [vmem:[#allocation5 + $0x70] sm:$0xff]
    %v54 = vld [vmem:[#allocation5 + $0x78] sm:$0xff]
    %v55 = vld [vmem:[#allocation5 + $0x80] sm:$0xff]
    %v56 = vld [vmem:[#allocation5 + $0x88] sm:$0xff]
    %v57 = vld [vmem:[#allocation5 + $0x90] sm:$0xff]
    %v58 = vld [vmem:[#allocation5 + $0x98] sm:$0xff]
    %v59 = vld [vmem:[#allocation5 + $0xa0] sm:$0xff]
    %v60 = vld [vmem:[#allocation5 + $0xa8] sm:$0xff]
    %v61 = vld [vmem:[#allocation5 + $0xb0] sm:$0xff]
    %v62 = vld [vmem:[#allocation5 + $0xb8] sm:$0xff]
    %v63 = vld [vmem:[#allocation5 + $0xc0] sm:$0xff]
    %v64 = vld [vmem:[#allocation5 + $0xc8] sm:$0xff]
    %v65 = vld [vmem:[#allocation5 + $0xd0] sm:$0xff]
    %v66 = vld [vmem:[#allocation5 + $0xd8] sm:$0xff]
    %v67 = vld [vmem:[#allocation5 + $0xe0] sm:$0xff]
    %v68 = vld [vmem:[#allocation5 + $0xe8] sm:$0xff]
    %v69 = vld [vmem:[#allocation5 + $0xf0] sm:$0xff]
    %v70 = vld [vmem:[#allocation5 + $0xf8] sm:$0xff]
    %v71 = vld [vmem:[#allocation5 + $0x100] sm:$0xff]
    %v72 = vld [vmem:[#allocation5 + $0x108] sm:$0xff]
    %v73 = vld [vmem:[#allocation5 + $0x110] sm:$0xff]
    %v74 = vld [vmem:[#allocation5 + $0x118] sm:$0xff]
    %v75 = vld [vmem:[#allocation5 + $0x120] sm:$0xff]
    %v76 = vld [vmem:[#allocation5 + $0x128] sm:$0xff]
    %v77 = vld [vmem:[#allocation5 + $0x130] sm:$0xff]
    %v78 = vld [vmem:[#allocation5 + $0x138] sm:$0xff]
    %v79 = vld [vmem:[#allocation5 + $0x140] sm:$0xff]
    %v80 = vld [vmem:[#allocation5 + $0x148] sm:$0xff]
    %v81 = vld [vmem:[#allocation5 + $0x150] sm:$0xff]
    %v82 = vld [vmem:[#allocation5 + $0x158] sm:$0xff]
    %v83 = vld [vmem:[#allocation5 + $0x160] sm:$0xff]
    %v84 = vld [vmem:[#allocation5 + $0x168] sm:$0xff]
    %v85 = vld [vmem:[#allocation5 + $0x170] sm:$0xff]
    %v86 = vld [vmem:[#allocation5 + $0x178] sm:$0xff]
    %v87 = vld [vmem:[#allocation5 + $0x180] sm:$0x1]
    %v88 = vld [vmem:[#allocation5 + $0x188] sm:$0x1]
    %v89 = vld [vmem:[#allocation5 + $0x190] sm:$0x1]
    %v90 = vlaneseq
    %v91 = vshrl.u32 %v90, 7
    %v92 = vsub.s32 0, %v91
    %v93 = vrot.slane %v87, %v92
    %94 = vmatprep.subr.mxu0 0.0
    %95 = vmatpush1.msra.mxu0 %v39
    %96 = vmatprep.subr.mxu0 0.0
    %97 = vmatpush1.msra.mxu0 %v40
    %98 = vmatprep.subr.mxu0 0.0
    %99 = vmatpush1.msra.mxu0 %v41
    %100 = vmatprep.subr.mxu0 0.0
    %101 = vmatpush1.msra.mxu0 %v42
    %102 = vmatprep.subr.mxu0 0.0
    %103 = vmatpush1.msra.mxu0 %v43
    %104 = vmatprep.subr.mxu0 0.0
    %105 = vmatpush1.msra.mxu0 %v44
    %106 = vmatprep.subr.mxu0 0.0
    %107 = vmatpush1.msra.mxu0 %v45
    %108 = vmatprep.subr.mxu0 0.0
    %109 = vmatpush1.msra.mxu0 %v46
    %110 = vmatprep.subr.mxu0 0.0
    %111 = vmatpush1.msra.mxu0 %v47
    %112 = vmatprep.subr.mxu0 0.0
    %113 = vmatpush1.msra.mxu0 %v48
    %114 = vmatprep.subr.mxu0 0.0
    %115 = vmatpush1.msra.mxu0 %v49
    %116 = vmatprep.subr.mxu0 0.0
    %117 = vmatpush1.msra.mxu0 %v50
    %118 = vmatprep.subr.mxu0 0.0
    %119 = vmatpush1.msra.mxu0 %v51
    %120 = vmatprep.subr.mxu0 0.0
    %121 = vmatpush1.msra.mxu0 %v52
    %122 = vmatprep.subr.mxu0 0.0
    %123 = vmatpush1.msra.mxu0 %v53
    %124 = vmatprep.subr.mxu0 0.0
    %125 = vmatpush1.msra.mxu0 %v54
    %126 = vmatprep.subr.mxu0 0.0
    %127 = vmatpush1.msra.mxu0 0.0
    %128 = vmatprep.subr.mxu0 0.0
    %129 = vmatpush1.msra.mxu0 0.0
    %130 = vmatprep.subr.mxu0 0.0
    %131 = vmatpush1.msra.mxu0 0.0
    %132 = vmatprep.subr.mxu0 0.0
    %133 = vmatpush1.msra.mxu0 0.0
    %134 = vmatprep.subr.mxu0 0.0
    %135 = vmatpush1.msra.mxu0 0.0
    %136 = vmatprep.subr.mxu0 0.0
    %137 = vmatpush1.msra.mxu0 0.0
    %138 = vmatprep.subr.mxu0 0.0
    %139 = vmatpush1.msra.mxu0 0.0
    %140 = vmatprep.subr.mxu0 0.0
    %141 = vmatpush1.msra.mxu0 0.0
    %142 = vmatprep.subr.mxu0 0.0
    %143 = vmatpush1.msra.mxu0 0.0
    %144 = vmatprep.subr.mxu0 0.0
    %145 = vmatpush1.msra.mxu0 0.0
    %146 = vmatprep.subr.mxu0 0.0
    %147 = vmatpush1.msra.mxu0 0.0
    %148 = vmatprep.subr.mxu0 0.0
    %149 = vmatpush1.msra.mxu0 0.0
    %150 = vmatprep.subr.mxu0 0.0
    %151 = vmatpush1.msra.mxu0 0.0
    %152 = vmatprep.subr.mxu0 0.0
    %153 = vmatpush1.msra.mxu0 0.0
    %154 = vmatprep.subr.mxu0 0.0
    %155 = vmatpush1.msra.mxu0 0.0
    %156 = vmatprep.subr.mxu0 0.0
    %157 = vmatpush1.msra.mxu0 0.0
    %158 = vmatprep.mubr.f32.mxu0 0.0
    %159 = vmatmul.mubr.f32.gmra.mrb[0].mxu0 %v38
    %v160 = vpop.f32.mrb[0].mxu0
    %v161 = vadd.f32 %v93, %v160
    %v162 = vpop.f32.mrb[0].mxu0
    %163 = vdwg.mxu0
    %v164 = vmax.f32 %v161, 0.0
    %v165 = vlaneseq
    %v166 = vshrl.u32 %v165, 7
    %v167 = vsub.s32 0, %v166
    %v168 = vrot.slane %v88, %v167
    %169 = vmatprep.subr.mxu0 0.0
    %170 = vmatpush1.msra.mxu0 %v55
    %171 = vmatprep.subr.mxu0 0.0
    %172 = vmatpush1.msra.mxu0 %v56
    %173 = vmatprep.subr.mxu0 0.0
    %174 = vmatpush1.msra.mxu0 %v57
    %175 = vmatprep.subr.mxu0 0.0
    %176 = vmatpush1.msra.mxu0 %v58
    %177 = vmatprep.subr.mxu0 0.0
    %178 = vmatpush1.msra.mxu0 %v59
    %179 = vmatprep.subr.mxu0 0.0
    %180 = vmatpush1.msra.mxu0 %v60
    %181 = vmatprep.subr.mxu0 0.0
    %182 = vmatpush1.msra.mxu0 %v61
    %183 = vmatprep.subr.mxu0 0.0
    %184 = vmatpush1.msra.mxu0 %v62
    %185 = vmatprep.subr.mxu0 0.0
    %186 = vmatpush1.msra.mxu0 %v63
    %187 = vmatprep.subr.mxu0 0.0
    %188 = vmatpush1.msra.mxu0 %v64
    %189 = vmatprep.subr.mxu0 0.0
    %190 = vmatpush1.msra.mxu0 %v65
    %191 = vmatprep.subr.mxu0 0.0
    %192 = vmatpush1.msra.mxu0 %v66
    %193 = vmatprep.subr.mxu0 0.0
    %194 = vmatpush1.msra.mxu0 %v67
    %195 = vmatprep.subr.mxu0 0.0
    %196 = vmatpush1.msra.mxu0 %v68
    %197 = vmatprep.subr.mxu0 0.0
    %198 = vmatpush1.msra.mxu0 %v69
    %199 = vmatprep.subr.mxu0 0.0
    %200 = vmatpush1.msra.mxu0 %v70
    %201 = vmatprep.subr.mxu0 0.0
    %202 = vmatpush1.msra.mxu0 0.0
    %203 = vmatprep.subr.mxu0 0.0
    %204 = vmatpush1.msra.mxu0 0.0
    %205 = vmatprep.subr.mxu0 0.0
    %206 = vmatpush1.msra.mxu0 0.0
    %207 = vmatprep.subr.mxu0 0.0
    %208 = vmatpush1.msra.mxu0 0.0
    %209 = vmatprep.subr.mxu0 0.0
    %210 = vmatpush1.msra.mxu0 0.0
    %211 = vmatprep.subr.mxu0 0.0
    %212 = vmatpush1.msra.mxu0 0.0
    %213 = vmatprep.subr.mxu0 0.0
    %214 = vmatpush1.msra.mxu0 0.0
    %215 = vmatprep.subr.mxu0 0.0
    %216 = vmatpush1.msra.mxu0 0.0
    %217 = vmatprep.subr.mxu0 0.0
    %218 = vmatpush1.msra.mxu0 0.0
    %219 = vmatprep.subr.mxu0 0.0
    %220 = vmatpush1.msra.mxu0 0.0
    %221 = vmatprep.subr.mxu0 0.0
    %222 = vmatpush1.msra.mxu0 0.0
    %223 = vmatprep.subr.mxu0 0.0
    %224 = vmatpush1.msra.mxu0 0.0
    %225 = vmatprep.subr.mxu0 0.0
    %226 = vmatpush1.msra.mxu0 0.0
    %227 = vmatprep.subr.mxu0 0.0
    %228 = vmatpush1.msra.mxu0 0.0
    %229 = vmatprep.subr.mxu0 0.0
    %230 = vmatpush1.msra.mxu0 0.0
    %231 = vmatprep.subr.mxu0 0.0
    %232 = vmatpush1.msra.mxu0 0.0
    %233 = vmatprep.mubr.f32.mxu0 0.0
    %234 = vmatmul.mubr.f32.gmra.mrb[0].mxu0 %v164
    %v235 = vpop.f32.mrb[0].mxu0
    %v236 = vadd.f32 %v168, %v235
    %v237 = vpop.f32.mrb[0].mxu0
    %238 = vdwg.mxu0
    %v239 = vmax.f32 %v236, 0.0
    %v240 = vlaneseq
    %v241 = vshrl.u32 %v240, 7
    %v242 = vsub.s32 0, %v241
    %v243 = vrot.slane %v89, %v242
    %244 = vmatprep.subr.mxu0 0.0
    %245 = vmatpush1.msra.mxu0 %v71
    %246 = vmatprep.subr.mxu0 0.0
    %247 = vmatpush1.msra.mxu0 %v72
    %248 = vmatprep.subr.mxu0 0.0
    %249 = vmatpush1.msra.mxu0 %v73
    %250 = vmatprep.subr.mxu0 0.0
    %251 = vmatpush1.msra.mxu0 %v74
    %252 = vmatprep.subr.mxu0 0.0
    %253 = vmatpush1.msra.mxu0 %v75
    %254 = vmatprep.subr.mxu0 0.0
    %255 = vmatpush1.msra.mxu0 %v76
    %256 = vmatprep.subr.mxu0 0.0
    %257 = vmatpush1.msra.mxu0 %v77
    %258 = vmatprep.subr.mxu0 0.0
    %259 = vmatpush1.msra.mxu0 %v78
    %260 = vmatprep.subr.mxu0 0.0
    %261 = vmatpush1.msra.mxu0 %v79
    %262 = vmatprep.subr.mxu0 0.0
    %263 = vmatpush1.msra.mxu0 %v80
    %264 = vmatprep.subr.mxu0 0.0
    %265 = vmatpush1.msra.mxu0 %v81
    %266 = vmatprep.subr.mxu0 0.0
    %267 = vmatpush1.msra.mxu0 %v82
    %268 = vmatprep.subr.mxu0 0.0
    %269 = vmatpush1.msra.mxu0 %v83
    %270 = vmatprep.subr.mxu0 0.0
    %271 = vmatpush1.msra.mxu0 %v84
    %272 = vmatprep.subr.mxu0 0.0
    %273 = vmatpush1.msra.mxu0 %v85
    %274 = vmatprep.subr.mxu0 0.0
    %275 = vmatpush1.msra.mxu0 %v86
    %276 = vmatprep.subr.mxu0 0.0
    %277 = vmatpush1.msra.mxu0 0.0
    %278 = vmatprep.subr.mxu0 0.0
    %279 = vmatpush1.msra.mxu0 0.0
    %280 = vmatprep.subr.mxu0 0.0
    %281 = vmatpush1.msra.mxu0 0.0
    %282 = vmatprep.subr.mxu0 0.0
    %283 = vmatpush1.msra.mxu0 0.0
    %284 = vmatprep.subr.mxu0 0.0
    %285 = vmatpush1.msra.mxu0 0.0
    %286 = vmatprep.subr.mxu0 0.0
    %287 = vmatpush1.msra.mxu0 0.0
    %288 = vmatprep.subr.mxu0 0.0
    %289 = vmatpush1.msra.mxu0 0.0
    %290 = vmatprep.subr.mxu0 0.0
    %291 = vmatpush1.msra.mxu0 0.0
    %292 = vmatprep.subr.mxu0 0.0
    %293 = vmatpush1.msra.mxu0 0.0
    %294 = vmatprep.subr.mxu0 0.0
    %295 = vmatpush1.msra.mxu0 0.0
    %296 = vmatprep.subr.mxu0 0.0
    %297 = vmatpush1.msra.mxu0 0.0
    %298 = vmatprep.subr.mxu0 0.0
    %299 = vmatpush1.msra.mxu0 0.0
    %300 = vmatprep.subr.mxu0 0.0
    %301 = vmatpush1.msra.mxu0 0.0
    %302 = vmatprep.subr.mxu0 0.0
    %303 = vmatpush1.msra.mxu0 0.0
    %304 = vmatprep.subr.mxu0 0.0
    %305 = vmatpush1.msra.mxu0 0.0
    %306 = vmatprep.subr.mxu0 0.0
    %307 = vmatpush1.msra.mxu0 0.0
    %308 = vmatprep.mubr.f32.mxu0 0.0
    %309 = vmatmul.mubr.f32.gmra.mrb[0].mxu0 %v239
    %v310 = vpop.f32.mrb[0].mxu0
    %v311 = vadd.f32 %v243, %v310
    %v312 = vpop.f32.mrb[0].mxu0
    %313 = vdwg.mxu0
    %314 = vst [vmem:[#allocation7] sm:$0xff] %v311
    // Predicated region
    $region18: #{tpu_custom_call.1} parent=1 // pred_check
      _
    $region19: #{tpu_custom_call.1} parent=1 // pred_check_branch
      %316 = sbr.rel (0) target = $region21
    $region20: #{tpu_custom_call.1} parent=1 // pred_region
      %s318 = ssub.s32 128, 128
      %319 = vsyncadd [#allocation4], %s318
      %s321 = sshll.u32 [#allocation7], 4
      %s322 = int_to_ptr.vmem [resolvable:$true] %s321
      %324 = dma.vmem_to_hbm [thread:$0]  %s322, 128, %s2, [#allocation4]
    $region21: #{tpu_custom_call.1} parent=1 // pred_fallthru
      _
    // Predicated region
    $region22: #{tpu_custom_call.1} parent=1 // pred_check
      _
    $region23: #{tpu_custom_call.1} parent=1 // pred_check_branch
      %326 = sbr.rel (0) target = $region25
    $region24: #{tpu_custom_call.1} parent=1 // pred_region
      %327 = dma.done [#allocation4], 128
    $region25: #{tpu_custom_call.1} parent=1 // pred_fallthru
      _
    %328 = vsyncpa [#allocation3], 1
    %329 = vsyncpa [#allocation6], 1
    %330 = vsyncpa [#allocation4], 1

</llo_original>
